<compile_context>
chip_gen: v7x
topology: tpu7x:2x2x1
jax: 0.10.0
libtpu: 0.0.40
codegen_flags: <defaults>
</compile_context>

<pallas_src>
import numpy as np

import jax
import jax.numpy as jnp
from jax import lax
from jax.experimental import pallas as pl
from jax.experimental.pallas import tpu as pltpu


def _round_up(x, m):
    return ((x + m - 1) // m) * m


_TM_MAX = 256   # anchor-row tile   (multiple of 8; 256-aligned for v6e/v7x MXU)
_TN_MAX = 512   # candidate-col tile (multiple of 128)


def _similarity_loss_kernel(counts_ref, an_ref, aa_ref, pos_ref, neg_ref, out_ref):
    """One (row-tile i, col-tile j) grid step.

    counts_ref: (2,) int32 SMEM (scalar prefetch) -> [Na valid rows, Nc valid cols]
    an_ref:     (TM, Dp) f32 VMEM  anchor_n tile (zero padded)
    aa_ref:     (TM, Dp) f32 VMEM  anchor_a tile (zero padded)
    pos_ref:    (TN, Dp) f32 VMEM  positive tile (zero padded)
    neg_ref:    (TN, Dp) f32 VMEM  negative tile (zero padded)
    out_ref:    (1, 8, 128) f32 VMEM  per-row-tile partial sum (broadcast over block)
    """
    na = counts_ref[0]
    nc = counts_ref[1]
    i = pl.program_id(0)
    j = pl.program_id(1)
    tm = an_ref.shape[0]   # static
    tn = pos_ref.shape[0]  # static

    an = an_ref[...]
    aa = aa_ref[...]
    pos = pos_ref[...]
    neg = neg_ref[...]

    # Contract over the feature (lane) axis: X @ Y.T without explicit transpose.
    dn = (((1,), (1,)), ((), ()))
    pd_n = lax.dot_general(an, pos, dn, preferred_element_type=jnp.float32)  # (TM, TN)
    nd_n = lax.dot_general(an, neg, dn, preferred_element_type=jnp.float32)
    nd_a = lax.dot_general(aa, pos, dn, preferred_element_type=jnp.float32)
    pd_a = lax.dot_general(aa, neg, dn, preferred_element_type=jnp.float32)

    eps = jnp.float32(1e-4)
    e_pn = jnp.exp(pd_n)
    e_nn = jnp.exp(nd_n)
    e_pa = jnp.exp(pd_a)
    e_na = jnp.exp(nd_a)

    # 0.5*(log A + log B + log C + log D) - pd_n - pd_a, with logs fused pairwise.
    total = (jnp.log((e_pn + e_nn + eps) * (e_pa + e_na + eps))
             + jnp.log((e_pn + e_na + eps) * (e_pa + e_nn + eps))
             ) * jnp.float32(0.5) - pd_n - pd_a

    # Mask zero-padded anchor rows / candidate columns (global indices).
    rows = lax.broadcasted_iota(jnp.int32, (tm, tn), 0) + i * tm
    cols = lax.broadcasted_iota(jnp.int32, (tm, tn), 1) + j * tn
    mask = (rows < na) & (cols < nc)
    partial = jnp.sum(jnp.where(mask, total, jnp.float32(0.0)))

    # Output block is resident across the inner (reduction) axis j.
    @pl.when(j == 0)
    def _():
        out_ref[...] = jnp.zeros_like(out_ref)

    out_ref[...] += partial


def similarity_loss(anchor_n, anchor_a, positive, negative):
    """JAX/Pallas equivalent of SimilarityLoss.forward. Returns an f32 scalar."""
    na, d = anchor_n.shape
    assert anchor_a.shape == (na, d), "anchor_n / anchor_a must share shape"
    nc, d2 = positive.shape
    assert d2 == d and negative.shape == (nc, d), "positive / negative must share shape"

    if na == 0 or nc == 0:
        return jnp.float32(jnp.nan)  # mean of an empty tensor, like the reference

    tm = min(_TM_MAX, _round_up(max(na, 8), 8))
    tn = min(_TN_MAX, _round_up(max(nc, 128), 128))
    dp = _round_up(max(d, 128), 128)
    nap = _round_up(na, tm)
    ncp = _round_up(nc, tn)
    r_tiles = nap // tm
    c_tiles = ncp // tn

    def pad_to(arr, rows):
        if arr.dtype != jnp.float32:
            arr = arr.astype(jnp.float32)
        pr, pc = rows - arr.shape[0], dp - arr.shape[1]
        if pr or pc:  # no-op (elided) for already tile-aligned inputs
            arr = jnp.pad(arr, ((0, pr), (0, pc)))
        return arr

    an = pad_to(anchor_n, nap)
    aa = pad_to(anchor_a, nap)
    pos = pad_to(positive, ncp)
    neg = pad_to(negative, ncp)
    counts = jnp.array([na, nc], dtype=jnp.int32)

    partials = pl.pallas_call(
        _similarity_loss_kernel,
        out_shape=jax.ShapeDtypeStruct((r_tiles, 8, 128), jnp.float32),
        grid_spec=pltpu.PrefetchScalarGridSpec(
            num_scalar_prefetch=1,
            grid=(r_tiles, c_tiles),
            in_specs=[
                # anchor tiles: constant along the inner col axis -> no re-DMA per j
                pl.BlockSpec((tm, dp), lambda i, j, counts: (i, 0)),
                pl.BlockSpec((tm, dp), lambda i, j, counts: (i, 0)),
                pl.BlockSpec((tn, dp), lambda i, j, counts: (j, 0)),
                pl.BlockSpec((tn, dp), lambda i, j, counts: (j, 0)),
            ],
            out_specs=pl.BlockSpec((1, 8, 128), lambda i, j, counts: (i, 0, 0)),
        ),
        compiler_params=pltpu.CompilerParams(
            dimension_semantics=("parallel", "arbitrary")),
    )(counts, an, aa, pos, neg)

    # Per-row-tile partials (each block holds its scalar broadcast); reduce on host.
    denom = float(na * nc)  # Python ints -> no int32 overflow
    return jnp.sum(partials[:, 0, 0]) / jnp.float32(denom)


def _reference_numpy(anchor_n, anchor_a, positive, negative):
    """Direct float64 translation of the PyTorch forward (for verification)."""
    an = np.asarray(anchor_n, np.float64)
    aa = np.asarray(anchor_a, np.float64)
    p = np.asarray(positive, np.float64)
    ng = np.asarray(negative, np.float64)

    pd_n = an @ p.T
    nd_n = an @ ng.T
    pd_a = aa @ ng.T
    nd_a = aa @ p.T
    eps = 1e-4

    l_nn = -np.log(np.exp(pd_n) / (np.exp(pd_n) + np.exp(nd_n) + eps))
    l_aa = -np.log(np.exp(pd_a) / (np.exp(pd_a) + np.exp(nd_a) + eps))
    l_nm = -np.log(np.exp(pd_n) / (np.exp(pd_n) + np.exp(nd_a) + eps))
    l_am = -np.log(np.exp(pd_a) / (np.exp(pd_a) + np.exp(nd_n) + eps))
    loss = (l_nn + l_aa + l_nm + l_am) / 2.0
    return loss.mean()


if __name__ == "__main__":
    key = jax.random.PRNGKey(0)
    k1, k2, k3, k4 = jax.random.split(key, 4)

    # Small shapes consistent with the module: feature matrices (rows, hidden).
    na, nc, d = 6, 5, 32
    scale = 0.2  # keep dot products modest so exp() stays well-conditioned
    anchor_n = scale * jax.random.normal(k1, (na, d), dtype=jnp.float32)
    anchor_a = scale * jax.random.normal(k2, (na, d), dtype=jnp.float32)
    positive = scale * jax.random.normal(k3, (nc, d), dtype=jnp.float32)
    negative = scale * jax.random.normal(k4, (nc, d), dtype=jnp.float32)

    loss = similarity_loss(anchor_n, anchor_a, positive, negative)
    loss = jax.block_until_ready(loss)

    ref = _reference_numpy(np.asarray(anchor_n), np.asarray(anchor_a),
                           np.asarray(positive), np.asarray(negative))
    np.testing.assert_allclose(np.asarray(loss), ref, rtol=5e-4, atol=1e-5)

    print("KERNEL_OK")
</pallas_src>

<mosaic_0001>
module attributes {stable_mosaic.version = 11 : i64} {
  func.func @_similarity_loss_kernel(%arg0: i32, %arg1: i32, %arg2: memref<2xi32, #tpu.memory_space<smem>>, %arg3: memref<8x128xf32, #tpu.memory_space<vmem>>, %arg4: memref<8x128xf32, #tpu.memory_space<vmem>>, %arg5: memref<128x128xf32, #tpu.memory_space<vmem>>, %arg6: memref<128x128xf32, #tpu.memory_space<vmem>>, %arg7: memref<1x8x128xf32, #tpu.memory_space<vmem>>) attributes {dimension_semantics = [#tpu.dimension_semantics<parallel>, #tpu.dimension_semantics<arbitrary>], iteration_bounds = array<i64: 1, 1>, scalar_prefetch = 1 : i64, scratch_operands = 0 : i64, tpu.core_type = #tpu.core_type<tc>, window_params = [{transform_indices = @transform_0, window_bounds = array<i64: 8, 128>}, {transform_indices = @transform_1, window_bounds = array<i64: 8, 128>}, {transform_indices = @transform_2, window_bounds = array<i64: 128, 128>}, {transform_indices = @transform_3, window_bounds = array<i64: 128, 128>}, {transform_indices = @transform_4, window_bounds = array<i64: 1, 8, 128>}]} {
    %c0 = arith.constant 0 : index
    %0 = memref.load %arg2[%c0] : memref<2xi32, #tpu.memory_space<smem>>
    %c1 = arith.constant 1 : index
    %1 = memref.load %arg2[%c1] : memref<2xi32, #tpu.memory_space<smem>>
    %c0_0 = arith.constant 0 : index
    %c0_1 = arith.constant 0 : index
    %2 = vector.load %arg3[%c0_0, %c0_1] : memref<8x128xf32, #tpu.memory_space<vmem>>, vector<8x128xf32>
    %c0_2 = arith.constant 0 : index
    %c0_3 = arith.constant 0 : index
    %3 = vector.load %arg4[%c0_2, %c0_3] : memref<8x128xf32, #tpu.memory_space<vmem>>, vector<8x128xf32>
    %c0_4 = arith.constant 0 : index
    %c0_5 = arith.constant 0 : index
    %4 = vector.load %arg5[%c0_4, %c0_5] : memref<128x128xf32, #tpu.memory_space<vmem>>, vector<128x128xf32>
    %c0_6 = arith.constant 0 : index
    %c0_7 = arith.constant 0 : index
    %5 = vector.load %arg6[%c0_6, %c0_7] : memref<128x128xf32, #tpu.memory_space<vmem>>, vector<128x128xf32>
    %cst = arith.constant dense<0.000000e+00> : vector<8x128xf32>
    %6 = tpu.matmul %2, %4, %cst {dimension_numbers = #tpu.dot_dimension_numbers<[1], [1], [0], [0], [0, 0, 1, 0], [], []>} : vector<8x128xf32>, vector<128x128xf32>, vector<8x128xf32> -> vector<8x128xf32>
    %cst_8 = arith.constant dense<0.000000e+00> : vector<8x128xf32>
    %7 = tpu.matmul %2, %5, %cst_8 {dimension_numbers = #tpu.dot_dimension_numbers<[1], [1], [0], [0], [0, 0, 1, 0], [], []>} : vector<8x128xf32>, vector<128x128xf32>, vector<8x128xf32> -> vector<8x128xf32>
    %cst_9 = arith.constant dense<0.000000e+00> : vector<8x128xf32>
    %8 = tpu.matmul %3, %4, %cst_9 {dimension_numbers = #tpu.dot_dimension_numbers<[1], [1], [0], [0], [0, 0, 1, 0], [], []>} : vector<8x128xf32>, vector<128x128xf32>, vector<8x128xf32> -> vector<8x128xf32>
    %cst_10 = arith.constant dense<0.000000e+00> : vector<8x128xf32>
    %9 = tpu.matmul %3, %5, %cst_10 {dimension_numbers = #tpu.dot_dimension_numbers<[1], [1], [0], [0], [0, 0, 1, 0], [], []>} : vector<8x128xf32>, vector<128x128xf32>, vector<8x128xf32> -> vector<8x128xf32>
    %10 = math.exp %6 : vector<8x128xf32>
    %11 = math.exp %7 : vector<8x128xf32>
    %12 = math.exp %9 : vector<8x128xf32>
    %13 = math.exp %8 : vector<8x128xf32>
    %14 = arith.addf %10, %11 : vector<8x128xf32>
    %cst_11 = arith.constant 9.99999974E-5 : f32
    %15 = vector.broadcast %cst_11 : f32 to vector<8x128xf32>
    %16 = arith.addf %14, %15 : vector<8x128xf32>
    %17 = arith.addf %12, %13 : vector<8x128xf32>
    %cst_12 = arith.constant 9.99999974E-5 : f32
    %18 = vector.broadcast %cst_12 : f32 to vector<8x128xf32>
    %19 = arith.addf %17, %18 : vector<8x128xf32>
    %20 = arith.mulf %16, %19 : vector<8x128xf32>
    %21 = math.log %20 : vector<8x128xf32>
    %22 = arith.addf %10, %13 : vector<8x128xf32>
    %cst_13 = arith.constant 9.99999974E-5 : f32
    %23 = vector.broadcast %cst_13 : f32 to vector<8x128xf32>
    %24 = arith.addf %22, %23 : vector<8x128xf32>
    %25 = arith.addf %12, %11 : vector<8x128xf32>
    %cst_14 = arith.constant 9.99999974E-5 : f32
    %26 = vector.broadcast %cst_14 : f32 to vector<8x128xf32>
    %27 = arith.addf %25, %26 : vector<8x128xf32>
    %28 = arith.mulf %24, %27 : vector<8x128xf32>
    %29 = math.log %28 : vector<8x128xf32>
    %30 = arith.addf %21, %29 : vector<8x128xf32>
    %cst_15 = arith.constant 5.000000e-01 : f32
    %31 = vector.broadcast %cst_15 : f32 to vector<8x128xf32>
    %32 = arith.mulf %30, %31 : vector<8x128xf32>
    %33 = arith.subf %32, %6 : vector<8x128xf32>
    %34 = arith.subf %33, %9 : vector<8x128xf32>
    %35 = tpu.iota {dimensions = array<i32: 0>} : vector<8x128xi32>
    %c8_i32 = arith.constant 8 : i32
    %36 = arith.muli %arg0, %c8_i32 : i32
    %37 = vector.broadcast %36 : i32 to vector<8x128xi32>
    %38 = arith.addi %35, %37 : vector<8x128xi32>
    %39 = tpu.iota {dimensions = array<i32: 1>} : vector<8x128xi32>
    %c128_i32 = arith.constant 128 : i32
    %40 = arith.muli %arg1, %c128_i32 : i32
    %41 = vector.broadcast %40 : i32 to vector<8x128xi32>
    %42 = arith.addi %39, %41 : vector<8x128xi32>
    %43 = vector.broadcast %0 : i32 to vector<8x128xi32>
    %44 = arith.cmpi slt, %38, %43 : vector<8x128xi32>
    %45 = vector.broadcast %1 : i32 to vector<8x128xi32>
    %46 = arith.cmpi slt, %42, %45 : vector<8x128xi32>
    %47 = arith.andi %44, %46 : vector<8x128xi1>
    %cst_16 = arith.constant 0.000000e+00 : f32
    %48 = vector.broadcast %cst_16 : f32 to vector<8x128xf32>
    %49 = arith.select %47, %34, %48 : vector<8x128xi1>, vector<8x128xf32>
    %50 = vector.shape_cast %49 : vector<8x128xf32> to vector<1x8x128xf32>
    %cst_17 = arith.constant dense<0.000000e+00> : vector<1xf32>
    %51 = vector.multi_reduction <add>, %50, %cst_17 [1, 2] : vector<1x8x128xf32> to vector<1xf32>
    %52 = vector.shape_cast %51 : vector<1xf32> to vector<1x1x1xf32>
    %53 = vector.extract %52[0, 0, 0] : f32 from vector<1x1x1xf32>
    %c0_i32 = arith.constant 0 : i32
    %54 = arith.cmpi eq, %arg1, %c0_i32 : i32
    %55 = arith.extui %54 : i1 to i32
    %c0_i32_18 = arith.constant 0 : i32
    %56 = arith.cmpi ne, %55, %c0_i32_18 : i32
    scf.if %56 {
      %cst_25 = arith.constant 0.000000e+00 : f32
      %61 = vector.broadcast %cst_25 : f32 to vector<1x8x128xf32>
      %c0_26 = arith.constant 0 : index
      %c0_27 = arith.constant 0 : index
      %c0_28 = arith.constant 0 : index
      %62 = vector.load %arg7[%c0_26, %c0_27, %c0_28] : memref<1x8x128xf32, #tpu.memory_space<vmem>>, vector<1x8x128xf32>
      tpu.vector_store %arg7[%c0_26, %c0_27, %c0_28], %61 {strides = array<i32>} : memref<1x8x128xf32, #tpu.memory_space<vmem>>, vector<1x8x128xf32>,
    } else {
    }
    %c0_19 = arith.constant 0 : index
    %c0_20 = arith.constant 0 : index
    %c0_21 = arith.constant 0 : index
    %57 = vector.load %arg7[%c0_19, %c0_20, %c0_21] : memref<1x8x128xf32, #tpu.memory_space<vmem>>, vector<1x8x128xf32>
    %58 = vector.broadcast %53 : f32 to vector<1x8x128xf32>
    %59 = arith.addf %57, %58 : vector<1x8x128xf32>
    %c0_22 = arith.constant 0 : index
    %c0_23 = arith.constant 0 : index
    %c0_24 = arith.constant 0 : index
    %60 = vector.load %arg7[%c0_22, %c0_23, %c0_24] : memref<1x8x128xf32, #tpu.memory_space<vmem>>, vector<1x8x128xf32>
    tpu.vector_store %arg7[%c0_22, %c0_23, %c0_24], %59 {strides = array<i32>} : memref<1x8x128xf32, #tpu.memory_space<vmem>>, vector<1x8x128xf32>,
    return
  }
  func.func @transform_0(%arg0: i32, %arg1: i32, %arg2: memref<2xi32, #tpu.memory_space<smem>>) -> (i32, i32) {
    %c0_i32 = arith.constant 0 : i32
    %c0_i32_0 = arith.constant 0 : i32
    return %arg0, %c0_i32 : i32, i32
  }
  func.func @transform_1(%arg0: i32, %arg1: i32, %arg2: memref<2xi32, #tpu.memory_space<smem>>) -> (i32, i32) {
    %c0_i32 = arith.constant 0 : i32
    %c0_i32_0 = arith.constant 0 : i32
    return %arg0, %c0_i32 : i32, i32
  }
  func.func @transform_2(%arg0: i32, %arg1: i32, %arg2: memref<2xi32, #tpu.memory_space<smem>>) -> (i32, i32) {
    %c0_i32 = arith.constant 0 : i32
    %c0_i32_0 = arith.constant 0 : i32
    return %arg1, %c0_i32 : i32, i32
  }
  func.func @transform_3(%arg0: i32, %arg1: i32, %arg2: memref<2xi32, #tpu.memory_space<smem>>) -> (i32, i32) {
    %c0_i32 = arith.constant 0 : i32
    %c0_i32_0 = arith.constant 0 : i32
    return %arg1, %c0_i32 : i32, i32
  }
  func.func @transform_4(%arg0: i32, %arg1: i32, %arg2: memref<2xi32, #tpu.memory_space<smem>>) -> (i32, i32, i32) {
    %c0_i32 = arith.constant 0 : i32
    %c0_i32_0 = arith.constant 0 : i32
    %c0_i32_1 = arith.constant 0 : i32
    return %arg0, %c0_i32, %c0_i32_0 : i32, i32, i32
  }
}

</mosaic_0001>

<llo_original>
// kernel: tpu_custom_call.1
$region0: #{tpu_custom_call.1}
  #allocation0 [shape = 'u32[]', space=smem, size = 0x4, offset = 0x4, fixed_abs, tag = 'smem constant byte address 0x4 - core index']
  #allocation1 [shape = 'u32[144,128]{1,0:T(1,128)}', space=vmem, size = 0x12000, scoped, tag = 'internal scratch']
  #allocation2 [shape = 's32[1]{0}', space=sflag, size = 0x4, scoped, tag = 'scoped memory for tpu_custom_call.1']
  #allocation3 [shape = 'u8[512]{0}', space=smem, size = 0x200, scoped, tag = 'prefetched SMEM operand 0']
  %s0 = inlined_call_operand.hbm [shape: s32[2], index: 0, kind: input, shape index: {}]
  %s1 = inlined_call_operand.hbm [shape: f32[8,128], index: 1, kind: input, shape index: {}]
  %s2 = inlined_call_operand.hbm [shape: f32[8,128], index: 2, kind: input, shape index: {}]
  %s3 = inlined_call_operand.hbm [shape: f32[128,128], index: 3, kind: input, shape index: {}]
  %s4 = inlined_call_operand.hbm [shape: f32[128,128], index: 4, kind: input, shape index: {}]
  %s5 = inlined_call_operand.hbm [shape: f32[1,8,128], index: 5, kind: output, shape index: {}]
  %s6 = sld [smem:[#allocation0]]
  $region46: #{tpu_custom_call.1} parent=0
    _
  %s8 = ssub.s32 1, %s6
  %s9 = scalar_select 0, %s8, %s6
  %11 = dma.hbm_to_smem %s0, 16, [#allocation3], [#allocation2]
  %12 = dma.done [#allocation2], 16
  %13 = sfence
  $region1: #{tpu_custom_call.1} parent=0
    #allocation4 [shape = 'u8[4096]{0}', space=vmem, size = 0x1000, scoped, tag = 'input window, operand 1, single buffered']
    #allocation5 [shape = 's32[1]{0}', space=sflag, size = 0x4, scoped, tag = 'scoped memory for tpu_custom_call.1']
    #allocation6 [shape = 's32[1]{0}', space=sflag, size = 0x4, scoped, tag = 'scoped memory for tpu_custom_call.1']
    #allocation7 [shape = 'u8[4096]{0}', space=vmem, size = 0x1000, scoped, tag = 'input window, operand 2, single buffered']
    #allocation8 [shape = 's32[1]{0}', space=sflag, size = 0x4, scoped, tag = 'scoped memory for tpu_custom_call.1']
    #allocation9 [shape = 'u8[65536]{0}', space=vmem, size = 0x10000, scoped, tag = 'input window, operand 3, single buffered']
    #allocation10 [shape = 'u8[65536]{0}', space=vmem, size = 0x10000, scoped, tag = 'input window, operand 4, single buffered']
    #allocation11 [shape = 's32[1]{0}', space=sflag, size = 0x4, scoped, tag = 'scoped memory for tpu_custom_call.1']
    #allocation12 [shape = 'u8[4096]{0}', space=vmem, size = 0x1000, scoped, tag = 'output window, operand 0, single buffered']
    %14 = vsyncpa [#allocation5], 0
    %15 = vsyncpa [#allocation8], 0
    %16 = vsyncpa [#allocation11], 0
    %17 = vsyncpa [#allocation6], 0
    // Predicated region
    $region2: #{tpu_custom_call.1} parent=1 // pred_check
      _
    $region3: #{tpu_custom_call.1} parent=1 // pred_check_branch
      %19 = sbr.rel (0) target = $region5
    $region4: #{tpu_custom_call.1} parent=1 // pred_region
      %s21 = ssub.s32 128, 128
      %22 = vsyncadd [#allocation5], %s21
      %s24 = sshll.u32 [#allocation4], 4
      %s25 = int_to_ptr.vmem [resolvable:$true] %s24
      %27 = dma.hbm_to_vmem [thread:$0]  %s1, 128, %s25, [#allocation5]
    $region5: #{tpu_custom_call.1} parent=1 // pred_fallthru
      _
    // Predicated region
    $region6: #{tpu_custom_call.1} parent=1 // pred_check
      _
    $region7: #{tpu_custom_call.1} parent=1 // pred_check_branch
      %29 = sbr.rel (0) target = $region9
    $region8: #{tpu_custom_call.1} parent=1 // pred_region
      %s31 = ssub.s32 128, 128
      %32 = vsyncadd [#allocation8], %s31
      %s34 = sshll.u32 [#allocation7], 4
      %s35 = int_to_ptr.vmem [resolvable:$true] %s34
      %37 = dma.hbm_to_vmem [thread:$0]  %s2, 128, %s35, [#allocation8]
    $region9: #{tpu_custom_call.1} parent=1 // pred_fallthru
      _
    // Predicated region
    $region10: #{tpu_custom_call.1} parent=1 // pred_check
      _
    $region11: #{tpu_custom_call.1} parent=1 // pred_check_branch
      %39 = sbr.rel (0) target = $region13
    $region12: #{tpu_custom_call.1} parent=1 // pred_region
      %s41 = ssub.s32 2048, 2048
      %42 = vsyncadd [#allocation8], %s41
      %s43 = sshll.u32 [#allocation9], 4
      %s44 = int_to_ptr.vmem [resolvable:$true] %s43
      %49 = dma.hbm_to_vmem [thread:$0]  %s3, 2048, %s44, [#allocation8], 128, 128, 8
    $region13: #{tpu_custom_call.1} parent=1 // pred_fallthru
      _
    // Predicated region
    $region14: #{tpu_custom_call.1} parent=1 // pred_check
      _
    $region15: #{tpu_custom_call.1} parent=1 // pred_check_branch
      %51 = sbr.rel (0) target = $region17
    $region16: #{tpu_custom_call.1} parent=1 // pred_region
      %s53 = ssub.s32 2048, 2048
      %54 = vsyncadd [#allocation11], %s53
      %s55 = sshll.u32 [#allocation10], 4
      %s56 = int_to_ptr.vmem [resolvable:$true] %s55
      %61 = dma.hbm_to_vmem [thread:$0]  %s4, 2048, %s56, [#allocation11], 128, 128, 8
    $region17: #{tpu_custom_call.1} parent=1 // pred_fallthru
      _
    // Predicated region
    $region18: #{tpu_custom_call.1} parent=1 // pred_check
      _
    $region19: #{tpu_custom_call.1} parent=1 // pred_check_branch
      %63 = sbr.rel (0) target = $region21
    $region20: #{tpu_custom_call.1} parent=1 // pred_region
      %64 = dma.done [#allocation5], 128
    $region21: #{tpu_custom_call.1} parent=1 // pred_fallthru
      _
    // Predicated region
    $region22: #{tpu_custom_call.1} parent=1 // pred_check
      _
    $region23: #{tpu_custom_call.1} parent=1 // pred_check_branch
      %66 = sbr.rel (0) target = $region25
    $region24: #{tpu_custom_call.1} parent=1 // pred_region
      %67 = dma.done [#allocation8], 128
    $region25: #{tpu_custom_call.1} parent=1 // pred_fallthru
      _
    // Predicated region
    $region26: #{tpu_custom_call.1} parent=1 // pred_check
      _
    $region27: #{tpu_custom_call.1} parent=1 // pred_check_branch
      %69 = sbr.rel (0) target = $region29
    $region28: #{tpu_custom_call.1} parent=1 // pred_region
      %70 = dma.done [#allocation8], 2048
    $region29: #{tpu_custom_call.1} parent=1 // pred_fallthru
      _
    // Predicated region
    $region30: #{tpu_custom_call.1} parent=1 // pred_check
      _
    $region31: #{tpu_custom_call.1} parent=1 // pred_check_branch
      %72 = sbr.rel (0) target = $region33
    $region32: #{tpu_custom_call.1} parent=1 // pred_region
      %73 = dma.done [#allocation11], 2048
    $region33: #{tpu_custom_call.1} parent=1 // pred_fallthru
      _
    %s74 = sld [smem:[#allocation3]]
    %s75 = sld [smem:[#allocation3 + $0x1]]
    %v76 = vld [vmem:[#allocation4] sm:$0xff]
    %v77 = vld [vmem:[#allocation7] sm:$0xff]
    %v78 = vld [vmem:[#allocation9] sm:$0xff]
    %v79 = vld [vmem:[#allocation9 + $0x8] sm:$0xff]
    %v80 = vld [vmem:[#allocation9 + $0x10] sm:$0xff]
    %v81 = vld [vmem:[#allocation9 + $0x18] sm:$0xff]
    %v82 = vld [vmem:[#allocation9 + $0x20] sm:$0xff]
    %v83 = vld [vmem:[#allocation9 + $0x28] sm:$0xff]
    %v84 = vld [vmem:[#allocation9 + $0x30] sm:$0xff]
    %v85 = vld [vmem:[#allocation9 + $0x38] sm:$0xff]
    %v86 = vld [vmem:[#allocation9 + $0x40] sm:$0xff]
    %v87 = vld [vmem:[#allocation9 + $0x48] sm:$0xff]
    %v88 = vld [vmem:[#allocation9 + $0x50] sm:$0xff]
    %v89 = vld [vmem:[#allocation9 + $0x58] sm:$0xff]
    %v90 = vld [vmem:[#allocation9 + $0x60] sm:$0xff]
    %v91 = vld [vmem:[#allocation9 + $0x68] sm:$0xff]
    %v92 = vld [vmem:[#allocation9 + $0x70] sm:$0xff]
    %v93 = vld [vmem:[#allocation9 + $0x78] sm:$0xff]
    %v94 = vld [vmem:[#allocation10] sm:$0xff]
    %v95 = vld [vmem:[#allocation10 + $0x8] sm:$0xff]
    %v96 = vld [vmem:[#allocation10 + $0x10] sm:$0xff]
    %v97 = vld [vmem:[#allocation10 + $0x18] sm:$0xff]
    %v98 = vld [vmem:[#allocation10 + $0x20] sm:$0xff]
    %v99 = vld [vmem:[#allocation10 + $0x28] sm:$0xff]
    %v100 = vld [vmem:[#allocation10 + $0x30] sm:$0xff]
    %v101 = vld [vmem:[#allocation10 + $0x38] sm:$0xff]
    %v102 = vld [vmem:[#allocation10 + $0x40] sm:$0xff]
    %v103 = vld [vmem:[#allocation10 + $0x48] sm:$0xff]
    %v104 = vld [vmem:[#allocation10 + $0x50] sm:$0xff]
    %v105 = vld [vmem:[#allocation10 + $0x58] sm:$0xff]
    %v106 = vld [vmem:[#allocation10 + $0x60] sm:$0xff]
    %v107 = vld [vmem:[#allocation10 + $0x68] sm:$0xff]
    %v108 = vld [vmem:[#allocation10 + $0x70] sm:$0xff]
    %v109 = vld [vmem:[#allocation10 + $0x78] sm:$0xff]
    %110 = vmatprep.subr.mxu0 0.0
    %111 = vmatpush1.xpose.msra.mxu0 %v78
    %112 = vmatprep.subr.mxu0 0.0
    %113 = vmatpush1.xpose.msra.mxu0 %v79
    %114 = vmatprep.subr.mxu0 0.0
    %115 = vmatpush1.xpose.msra.mxu0 %v80
    %116 = vmatprep.subr.mxu0 0.0
    %117 = vmatpush1.xpose.msra.mxu0 %v81
    %118 = vmatprep.subr.mxu0 0.0
    %119 = vmatpush1.xpose.msra.mxu0 %v82
    %120 = vmatprep.subr.mxu0 0.0
    %121 = vmatpush1.xpose.msra.mxu0 %v83
    %122 = vmatprep.subr.mxu0 0.0
    %123 = vmatpush1.xpose.msra.mxu0 %v84
    %124 = vmatprep.subr.mxu0 0.0
    %125 = vmatpush1.xpose.msra.mxu0 %v85
    %126 = vmatprep.subr.mxu0 0.0
    %127 = vmatpush1.xpose.msra.mxu0 %v86
    %128 = vmatprep.subr.mxu0 0.0
    %129 = vmatpush1.xpose.msra.mxu0 %v87
    %130 = vmatprep.subr.mxu0 0.0
    %131 = vmatpush1.xpose.msra.mxu0 %v88
    %132 = vmatprep.subr.mxu0 0.0
    %133 = vmatpush1.xpose.msra.mxu0 %v89
    %134 = vmatprep.subr.mxu0 0.0
    %135 = vmatpush1.xpose.msra.mxu0 %v90
    %136 = vmatprep.subr.mxu0 0.0
    %137 = vmatpush1.xpose.msra.mxu0 %v91
    %138 = vmatprep.subr.mxu0 0.0
    %139 = vmatpush1.xpose.msra.mxu0 %v92
    %140 = vmatprep.subr.mxu0 0.0
    %141 = vmatpush1.xpose.msra.mxu0 %v93
    %142 = vmatprep.subr.mxu0 0.0
    %143 = vmatpush1.xpose.msra.mxu0 0.0
    %144 = vmatprep.subr.mxu0 0.0
    %145 = vmatpush1.xpose.msra.mxu0 0.0
    %146 = vmatprep.subr.mxu0 0.0
    %147 = vmatpush1.xpose.msra.mxu0 0.0
    %148 = vmatprep.subr.mxu0 0.0
    %149 = vmatpush1.xpose.msra.mxu0 0.0
    %150 = vmatprep.subr.mxu0 0.0
    %151 = vmatpush1.xpose.msra.mxu0 0.0
    %152 = vmatprep.subr.mxu0 0.0
    %153 = vmatpush1.xpose.msra.mxu0 0.0
    %154 = vmatprep.subr.mxu0 0.0
    %155 = vmatpush1.xpose.msra.mxu0 0.0
    %156 = vmatprep.subr.mxu0 0.0
    %157 = vmatpush1.xpose.msra.mxu0 0.0
    %158 = vmatprep.subr.mxu0 0.0
    %159 = vmatpush1.xpose.msra.mxu0 0.0
    %160 = vmatprep.subr.mxu0 0.0
    %161 = vmatpush1.xpose.msra.mxu0 0.0
    %162 = vmatprep.subr.mxu0 0.0
    %163 = vmatpush1.xpose.msra.mxu0 0.0
    %164 = vmatprep.subr.mxu0 0.0
    %165 = vmatpush1.xpose.msra.mxu0 0.0
    %166 = vmatprep.subr.mxu0 0.0
    %167 = vmatpush1.xpose.msra.mxu0 0.0
    %168 = vmatprep.subr.mxu0 0.0
    %169 = vmatpush1.xpose.msra.mxu0 0.0
    %170 = vmatprep.subr.mxu0 0.0
    %171 = vmatpush1.xpose.msra.mxu0 0.0
    %172 = vmatprep.subr.mxu0 0.0
    %173 = vmatpush1.xpose.msra.mxu0 0.0
    %174 = vmatprep.mubr.f32.mxu0 0.0
    %175 = vmatmul.mubr.f32.gmra.mrb[0].mxu0 %v76
    %v176 = vpop.f32.mrb[0].mxu0
    %v177 = vadd.f32 0.0, %v176
    %v178 = vpop.f32.mrb[0].mxu0
    %179 = vdwg.mxu0
    %180 = vmatprep.subr.mxu0 0.0
    %181 = vmatpush1.xpose.msra.mxu0 %v94
    %182 = vmatprep.subr.mxu0 0.0
    %183 = vmatpush1.xpose.msra.mxu0 %v95
    %184 = vmatprep.subr.mxu0 0.0
    %185 = vmatpush1.xpose.msra.mxu0 %v96
    %186 = vmatprep.subr.mxu0 0.0
    %187 = vmatpush1.xpose.msra.mxu0 %v97
    %188 = vmatprep.subr.mxu0 0.0
    %189 = vmatpush1.xpose.msra.mxu0 %v98
    %190 = vmatprep.subr.mxu0 0.0
    %191 = vmatpush1.xpose.msra.mxu0 %v99
    %192 = vmatprep.subr.mxu0 0.0
    %193 = vmatpush1.xpose.msra.mxu0 %v100
    %194 = vmatprep.subr.mxu0 0.0
    %195 = vmatpush1.xpose.msra.mxu0 %v101
    %196 = vmatprep.subr.mxu0 0.0
    %197 = vmatpush1.xpose.msra.mxu0 %v102
    %198 = vmatprep.subr.mxu0 0.0
    %199 = vmatpush1.xpose.msra.mxu0 %v103
    %200 = vmatprep.subr.mxu0 0.0
    %201 = vmatpush1.xpose.msra.mxu0 %v104
    %202 = vmatprep.subr.mxu0 0.0
    %203 = vmatpush1.xpose.msra.mxu0 %v105
    %204 = vmatprep.subr.mxu0 0.0
    %205 = vmatpush1.xpose.msra.mxu0 %v106
    %206 = vmatprep.subr.mxu0 0.0
    %207 = vmatpush1.xpose.msra.mxu0 %v107
    %208 = vmatprep.subr.mxu0 0.0
    %209 = vmatpush1.xpose.msra.mxu0 %v108
    %210 = vmatprep.subr.mxu0 0.0
    %211 = vmatpush1.xpose.msra.mxu0 %v109
    %212 = vmatprep.subr.mxu0 0.0
    %213 = vmatpush1.xpose.msra.mxu0 0.0
    %214 = vmatprep.subr.mxu0 0.0
    %215 = vmatpush1.xpose.msra.mxu0 0.0
    %216 = vmatprep.subr.mxu0 0.0
    %217 = vmatpush1.xpose.msra.mxu0 0.0
    %218 = vmatprep.subr.mxu0 0.0
    %219 = vmatpush1.xpose.msra.mxu0 0.0
    %220 = vmatprep.subr.mxu0 0.0
    %221 = vmatpush1.xpose.msra.mxu0 0.0
    %222 = vmatprep.subr.mxu0 0.0
    %223 = vmatpush1.xpose.msra.mxu0 0.0
    %224 = vmatprep.subr.mxu0 0.0
    %225 = vmatpush1.xpose.msra.mxu0 0.0
    %226 = vmatprep.subr.mxu0 0.0
    %227 = vmatpush1.xpose.msra.mxu0 0.0
    %228 = vmatprep.subr.mxu0 0.0
    %229 = vmatpush1.xpose.msra.mxu0 0.0
    %230 = vmatprep.subr.mxu0 0.0
    %231 = vmatpush1.xpose.msra.mxu0 0.0
    %232 = vmatprep.subr.mxu0 0.0
    %233 = vmatpush1.xpose.msra.mxu0 0.0
    %234 = vmatprep.subr.mxu0 0.0
    %235 = vmatpush1.xpose.msra.mxu0 0.0
    %236 = vmatprep.subr.mxu0 0.0
    %237 = vmatpush1.xpose.msra.mxu0 0.0
    %238 = vmatprep.subr.mxu0 0.0
    %239 = vmatpush1.xpose.msra.mxu0 0.0
    %240 = vmatprep.subr.mxu0 0.0
    %241 = vmatpush1.xpose.msra.mxu0 0.0
    %242 = vmatprep.subr.mxu0 0.0
    %243 = vmatpush1.xpose.msra.mxu0 0.0
    %244 = vmatprep.mubr.f32.mxu0 0.0
    %245 = vmatmul.mubr.f32.gmra.mrb[0].mxu0 %v76
    %v246 = vpop.f32.mrb[0].mxu0
    %v247 = vadd.f32 0.0, %v246
    %v248 = vpop.f32.mrb[0].mxu0
    %249 = vdwg.mxu0
    %250 = vmatprep.subr.mxu0 0.0
    %251 = vmatpush1.xpose.msra.mxu0 %v78
    %252 = vmatprep.subr.mxu0 0.0
    %253 = vmatpush1.xpose.msra.mxu0 %v79
    %254 = vmatprep.subr.mxu0 0.0
    %255 = vmatpush1.xpose.msra.mxu0 %v80
    %256 = vmatprep.subr.mxu0 0.0
    %257 = vmatpush1.xpose.msra.mxu0 %v81
    %258 = vmatprep.subr.mxu0 0.0
    %259 = vmatpush1.xpose.msra.mxu0 %v82
    %260 = vmatprep.subr.mxu0 0.0
    %261 = vmatpush1.xpose.msra.mxu0 %v83
    %262 = vmatprep.subr.mxu0 0.0
    %263 = vmatpush1.xpose.msra.mxu0 %v84
    %264 = vmatprep.subr.mxu0 0.0
    %265 = vmatpush1.xpose.msra.mxu0 %v85
    %266 = vmatprep.subr.mxu0 0.0
    %267 = vmatpush1.xpose.msra.mxu0 %v86
    %268 = vmatprep.subr.mxu0 0.0
    %269 = vmatpush1.xpose.msra.mxu0 %v87
    %270 = vmatprep.subr.mxu0 0.0
    %271 = vmatpush1.xpose.msra.mxu0 %v88
    %272 = vmatprep.subr.mxu0 0.0
    %273 = vmatpush1.xpose.msra.mxu0 %v89
    %274 = vmatprep.subr.mxu0 0.0
    %275 = vmatpush1.xpose.msra.mxu0 %v90
    %276 = vmatprep.subr.mxu0 0.0
    %277 = vmatpush1.xpose.msra.mxu0 %v91
    %278 = vmatprep.subr.mxu0 0.0
    %279 = vmatpush1.xpose.msra.mxu0 %v92
    %280 = vmatprep.subr.mxu0 0.0
    %281 = vmatpush1.xpose.msra.mxu0 %v93
    %282 = vmatprep.subr.mxu0 0.0
    %283 = vmatpush1.xpose.msra.mxu0 0.0
    %284 = vmatprep.subr.mxu0 0.0
    %285 = vmatpush1.xpose.msra.mxu0 0.0
    %286 = vmatprep.subr.mxu0 0.0
    %287 = vmatpush1.xpose.msra.mxu0 0.0
    %288 = vmatprep.subr.mxu0 0.0
    %289 = vmatpush1.xpose.msra.mxu0 0.0
    %290 = vmatprep.subr.mxu0 0.0
    %291 = vmatpush1.xpose.msra.mxu0 0.0
    %292 = vmatprep.subr.mxu0 0.0
    %293 = vmatpush1.xpose.msra.mxu0 0.0
    %294 = vmatprep.subr.mxu0 0.0
    %295 = vmatpush1.xpose.msra.mxu0 0.0
    %296 = vmatprep.subr.mxu0 0.0
    %297 = vmatpush1.xpose.msra.mxu0 0.0
    %298 = vmatprep.subr.mxu0 0.0
    %299 = vmatpush1.xpose.msra.mxu0 0.0
    %300 = vmatprep.subr.mxu0 0.0
    %301 = vmatpush1.xpose.msra.mxu0 0.0
    %302 = vmatprep.subr.mxu0 0.0
    %303 = vmatpush1.xpose.msra.mxu0 0.0
    %304 = vmatprep.subr.mxu0 0.0
    %305 = vmatpush1.xpose.msra.mxu0 0.0
    %306 = vmatprep.subr.mxu0 0.0
    %307 = vmatpush1.xpose.msra.mxu0 0.0
    %308 = vmatprep.subr.mxu0 0.0
    %309 = vmatpush1.xpose.msra.mxu0 0.0
    %310 = vmatprep.subr.mxu0 0.0
    %311 = vmatpush1.xpose.msra.mxu0 0.0
    %312 = vmatprep.subr.mxu0 0.0
    %313 = vmatpush1.xpose.msra.mxu0 0.0
    %314 = vmatprep.mubr.f32.mxu0 0.0
    %315 = vmatmul.mubr.f32.gmra.mrb[0].mxu0 %v77
    %v316 = vpop.f32.mrb[0].mxu0
    %v317 = vadd.f32 0.0, %v316
    %v318 = vpop.f32.mrb[0].mxu0
    %319 = vdwg.mxu0
    %320 = vmatprep.subr.mxu0 0.0
    %321 = vmatpush1.xpose.msra.mxu0 %v94
    %322 = vmatprep.subr.mxu0 0.0
    %323 = vmatpush1.xpose.msra.mxu0 %v95
    %324 = vmatprep.subr.mxu0 0.0
    %325 = vmatpush1.xpose.msra.mxu0 %v96
    %326 = vmatprep.subr.mxu0 0.0
    %327 = vmatpush1.xpose.msra.mxu0 %v97
    %328 = vmatprep.subr.mxu0 0.0
    %329 = vmatpush1.xpose.msra.mxu0 %v98
    %330 = vmatprep.subr.mxu0 0.0
    %331 = vmatpush1.xpose.msra.mxu0 %v99
    %332 = vmatprep.subr.mxu0 0.0
    %333 = vmatpush1.xpose.msra.mxu0 %v100
    %334 = vmatprep.subr.mxu0 0.0
    %335 = vmatpush1.xpose.msra.mxu0 %v101
    %336 = vmatprep.subr.mxu0 0.0
    %337 = vmatpush1.xpose.msra.mxu0 %v102
    %338 = vmatprep.subr.mxu0 0.0
    %339 = vmatpush1.xpose.msra.mxu0 %v103
    %340 = vmatprep.subr.mxu0 0.0
    %341 = vmatpush1.xpose.msra.mxu0 %v104
    %342 = vmatprep.subr.mxu0 0.0
    %343 = vmatpush1.xpose.msra.mxu0 %v105
    %344 = vmatprep.subr.mxu0 0.0
    %345 = vmatpush1.xpose.msra.mxu0 %v106
    %346 = vmatprep.subr.mxu0 0.0
    %347 = vmatpush1.xpose.msra.mxu0 %v107
    %348 = vmatprep.subr.mxu0 0.0
    %349 = vmatpush1.xpose.msra.mxu0 %v108
    %350 = vmatprep.subr.mxu0 0.0
    %351 = vmatpush1.xpose.msra.mxu0 %v109
    %352 = vmatprep.subr.mxu0 0.0
    %353 = vmatpush1.xpose.msra.mxu0 0.0
    %354 = vmatprep.subr.mxu0 0.0
    %355 = vmatpush1.xpose.msra.mxu0 0.0
    %356 = vmatprep.subr.mxu0 0.0
    %357 = vmatpush1.xpose.msra.mxu0 0.0
    %358 = vmatprep.subr.mxu0 0.0
    %359 = vmatpush1.xpose.msra.mxu0 0.0
    %360 = vmatprep.subr.mxu0 0.0
    %361 = vmatpush1.xpose.msra.mxu0 0.0
    %362 = vmatprep.subr.mxu0 0.0
    %363 = vmatpush1.xpose.msra.mxu0 0.0
    %364 = vmatprep.subr.mxu0 0.0
    %365 = vmatpush1.xpose.msra.mxu0 0.0
    %366 = vmatprep.subr.mxu0 0.0
    %367 = vmatpush1.xpose.msra.mxu0 0.0
    %368 = vmatprep.subr.mxu0 0.0
    %369 = vmatpush1.xpose.msra.mxu0 0.0
    %370 = vmatprep.subr.mxu0 0.0
    %371 = vmatpush1.xpose.msra.mxu0 0.0
    %372 = vmatprep.subr.mxu0 0.0
    %373 = vmatpush1.xpose.msra.mxu0 0.0
    %374 = vmatprep.subr.mxu0 0.0
    %375 = vmatpush1.xpose.msra.mxu0 0.0
    %376 = vmatprep.subr.mxu0 0.0
    %377 = vmatpush1.xpose.msra.mxu0 0.0
    %378 = vmatprep.subr.mxu0 0.0
    %379 = vmatpush1.xpose.msra.mxu0 0.0
    %380 = vmatprep.subr.mxu0 0.0
    %381 = vmatpush1.xpose.msra.mxu0 0.0
    %382 = vmatprep.subr.mxu0 0.0
    %383 = vmatpush1.xpose.msra.mxu0 0.0
    %384 = vmatprep.mubr.f32.mxu0 0.0
    %385 = vmatmul.mubr.f32.gmra.mrb[0].mxu0 %v77
    %v386 = vpop.f32.mrb[0].mxu0
    %v387 = vadd.f32 0.0, %v386
    %v388 = vpop.f32.mrb[0].mxu0
    %389 = vdwg.mxu0
    %v390 = vmul.f32 %v177, 1.442695
    %v391 = vpow.pop %v390
    %v392 = vmul.f32 %v247, 1.442695
    %v393 = vpow.pop %v392
    %v394 = vmul.f32 %v387, 1.442695
    %v395 = vpow.pop %v394
    %v396 = vmul.f32 %v317, 1.442695
    %v397 = vpow.pop %v396
    %v398 = vadd.f32 %v391, %v393
    %v399 = vadd.f32 %v398, 0.0001
    %v400 = vadd.f32 %v395, %v397
    %v401 = vadd.f32 %v400, 0.0001
    %v402 = vmul.f32 %v399, %v401
    %v403 = vlog2.pop %v402
    %v404 = vmul.f32 %v403, 0.6931472
    %v405 = vadd.f32 %v391, %v397
    %v406 = vadd.f32 %v405, 0.0001
    %v407 = vadd.f32 %v395, %v393
    %v408 = vadd.f32 %v407, 0.0001
    %v409 = vmul.f32 %v406, %v408
    %v410 = vlog2.pop %v409
    %v411 = vmul.f32 %v410, 0.6931472
    %v412 = vadd.f32 %v404, %v411
    %v413 = vmul.f32 %v412, 0.5
    %v414 = vsub.f32 %v413, %v177
    %v415 = vsub.f32 %v414, %v387
    %v416 = vlaneseq
    %v417 = vshrl.u32 %v416, 7
    %s418 = smul.u32 0, 8
    %v419 = vstv %s418
    %v420 = vadd.s32 %v417, %v419
    %v421 = vlaneseq
    %v422 = vand.u32 %v421, 127
    %s423 = smul.u32 0, 128
    %v424 = vstv %s423
    %v425 = vadd.s32 %v422, %v424
    %v426 = vstv %s74
    %vm427 = vcmp.lt.s32.totalorder %v420, %v426
    %v428 = vstv %s75
    %vm429 = vcmp.lt.s32.totalorder %v425, %v428
    %vm430 = vmand %vm427, %vm429
    %v431 = vsel %vm430, %v415, 0.0
    %432 = vadd.xlane.f32.xlu0 %v431
    %v433 = vpop.xlane.xlu0 %432
    %v434 = vrot.slane %v433, 4
    %v435 = vadd.f32 %v433, %v434
    %v436 = vrot.slane %v435, 2
    %v437 = vadd.f32 %v435, %v436
    %v438 = vrot.slane %v437, 1
    %v439 = vadd.f32 %v437, %v438
    %s440 = vtos %v439
    %p441 = scmp.eq.s32.totalorder 0, 0
    // Predicated region
    $region34: #{tpu_custom_call.1} parent=1 // pred_check
      %p442 = pneg %p441
    $region35: #{tpu_custom_call.1} parent=1 // pred_check_branch
      %444 = sbr.rel (%p442) target = $region37
    $region36: #{tpu_custom_call.1} parent=1 // pred_region
      %445 = vst [vmem:[#allocation12] sm:$0xff] 0.0
    $region37: #{tpu_custom_call.1} parent=1 // pred_fallthru
      _
    %v446 = vld [vmem:[#allocation12] sm:$0xff]
    %v447 = vstv %s440
    %v448 = vadd.f32 %v446, %v447
    %449 = vst [vmem:[#allocation12] sm:$0xff] %v448
    // Predicated region
    $region38: #{tpu_custom_call.1} parent=1 // pred_check
      _
    $region39: #{tpu_custom_call.1} parent=1 // pred_check_branch
      %451 = sbr.rel (0) target = $region41
    $region40: #{tpu_custom_call.1} parent=1 // pred_region
      %s453 = ssub.s32 128, 128
      %454 = vsyncadd [#allocation6], %s453
      %s456 = sshll.u32 [#allocation12], 4
      %s457 = int_to_ptr.vmem [resolvable:$true] %s456
      %459 = dma.vmem_to_hbm [thread:$0]  %s457, 128, %s5, [#allocation6]
    $region41: #{tpu_custom_call.1} parent=1 // pred_fallthru
      _
    // Predicated region
    $region42: #{tpu_custom_call.1} parent=1 // pred_check
      _
    $region43: #{tpu_custom_call.1} parent=1 // pred_check_branch
      %461 = sbr.rel (0) target = $region45
    $region44: #{tpu_custom_call.1} parent=1 // pred_region
      %462 = dma.done [#allocation6], 128
    $region45: #{tpu_custom_call.1} parent=1 // pred_fallthru
      _
    %463 = vsyncpa [#allocation5], 1
    %464 = vsyncpa [#allocation8], 1
    %465 = vsyncpa [#allocation11], 1
    %466 = vsyncpa [#allocation6], 1

</llo_original>
